<compile_context>
chip_gen: v7x
topology: tpu7x:2x2x1
jax: 0.10.0
libtpu: 0.0.40
codegen_flags: <defaults>
</compile_context>

<pallas_src>
import functools

import numpy as np
import jax
import jax.numpy as jnp
from jax.experimental import pallas as pl
from jax.experimental.pallas import tpu as pltpu

LANE = 128  # TPU lane width; head output padded to a multiple of this


# ----------------------------- fused kernel -------------------------------- #

def _decoder_seq_kernel(x_ref, h0_ref, c0_ref, w_ref, b_ref, fcw_ref, fcb_ref,
                        pred_ref, h_out_ref, c_out_ref, xh_ref,
                        *, n_layers, hid_dim, in_dim, d_max):
    """One grid step == one decode time step; all layers + head fused.

    x_ref   : (B, in_dim)         this step's input (squeezed time block)
    h0_ref  : (L, B, H)           initial hidden (read only at t == 0)
    c0_ref  : (L, B, H)           initial cell   (read only at t == 0)
    w_ref   : (L, d_max+H, 4H)    packed [W_ih^T ; W_hh^T] per layer, bf16
    b_ref   : (L, 1, 4H)          b_ih + b_hh per layer, f32
    fcw_ref : (H, O_pad)          fc_out weight^T, zero-padded, bf16
    fcb_ref : (1, O_pad)          f32
    pred_ref: (B, O_pad)          this step's lane-dense prediction slab
    h_out_ref/c_out_ref: (L,B,H)  VMEM-resident state carry (constant block)
    xh_ref  : (B, d_max+H)        persistent packed-activation scratch, f32
    """
    H = hid_dim
    t = pl.program_id(0)

    @pl.when(t == 0)
    def _init():
        # Zero once so padding columns never hold NaN garbage; state <- inputs.
        xh_ref[...] = jnp.zeros_like(xh_ref)
        h_out_ref[...] = h0_ref[...]
        c_out_ref[...] = c0_ref[...]

    # This step's input goes into the "x slot" of the packed activation buffer.
    xh_ref[:, :in_dim] = x_ref[...]

    h_new = None
    for layer in range(n_layers):                 # static unroll (L is small)
        xh_ref[:, d_max:] = h_out_ref[layer]      # "h slot"
        xh = xh_ref[...].astype(jnp.bfloat16)     # single MXU operand
        gates = (jnp.dot(xh, w_ref[layer],
                         preferred_element_type=jnp.float32)
                 + b_ref[layer])                  # (B, 4H), f32 accumulate
        i_g = jax.nn.sigmoid(gates[:, 0 * H:1 * H])
        f_g = jax.nn.sigmoid(gates[:, 1 * H:2 * H])
        g_g = jnp.tanh(gates[:, 2 * H:3 * H])
        o_g = jax.nn.sigmoid(gates[:, 3 * H:4 * H])
        c_new = f_g * c_out_ref[layer] + i_g * g_g
        h_new = o_g * jnp.tanh(c_new)
        h_out_ref[layer] = h_new                  # state carried across steps
        c_out_ref[layer] = c_new
        if layer + 1 < n_layers:
            xh_ref[:, :H] = h_new                 # carried activation -> x slot

    # Linear head on last layer's hidden; lane-dense (O_pad = multiple of 128).
    pred_ref[...] = (jnp.dot(h_new.astype(jnp.bfloat16), fcw_ref[...],
                             preferred_element_type=jnp.float32)
                     + fcb_ref[...])


# ----------------------------- wrappers -------------------------------------- #

def decoder_forward_seq(params, inputs, hidden, cell, *, output_dim):
    """Run T decode steps in ONE pallas_call.

    inputs: (T, B, input_dim) time-major
    hidden/cell: (n_layers, B, hid_dim)
    returns (predictions (T, B, output_dim), hidden, cell)
    """
    T, B, in_dim = inputs.shape
    L, _, H = hidden.shape
    d_max = params["w"].shape[1] - H
    o_pad = params["fc_w"].shape[1]

    kernel = functools.partial(_decoder_seq_kernel, n_layers=L, hid_dim=H,
                               in_dim=in_dim, d_max=d_max)

    flops = T * (L * 2 * B * (d_max + H) * 4 * H + 2 * B * H * o_pad)
    transcendentals = T * L * B * 5 * H
    bytes_accessed = ((inputs.size + 4 * hidden.size + T * B * o_pad
                       + params["b"].size + params["fc_b"].size) * 4
                      + (params["w"].size + params["fc_w"].size) * 2)

    preds, new_h, new_c = pl.pallas_call(
        kernel,
        out_shape=(jax.ShapeDtypeStruct((T, B, o_pad), jnp.float32),
                   jax.ShapeDtypeStruct((L, B, H), jnp.float32),
                   jax.ShapeDtypeStruct((L, B, H), jnp.float32)),
        grid_spec=pltpu.PrefetchScalarGridSpec(
            num_scalar_prefetch=0,
            grid=(T,),
            in_specs=[
                pl.BlockSpec((None, B, in_dim), lambda t: (t, 0, 0)),       # x_t
                pl.BlockSpec((L, B, H), lambda t: (0, 0, 0)),               # h0
                pl.BlockSpec((L, B, H), lambda t: (0, 0, 0)),               # c0
                pl.BlockSpec((L, d_max + H, 4 * H), lambda t: (0, 0, 0)),   # w
                pl.BlockSpec((L, 1, 4 * H), lambda t: (0, 0, 0)),           # b
                pl.BlockSpec((H, o_pad), lambda t: (0, 0)),                 # fc_w
                pl.BlockSpec((1, o_pad), lambda t: (0, 0)),                 # fc_b
            ],
            out_specs=(
                pl.BlockSpec((None, B, o_pad), lambda t: (t, 0, 0)),        # preds
                pl.BlockSpec((L, B, H), lambda t: (0, 0, 0)),               # h out
                pl.BlockSpec((L, B, H), lambda t: (0, 0, 0)),               # c out
            ),
            scratch_shapes=[pltpu.VMEM((B, d_max + H), jnp.float32)],       # xh
        ),
        compiler_params=pltpu.CompilerParams(
            dimension_semantics=("arbitrary",)),
        cost_estimate=pl.CostEstimate(flops=flops,
                                      transcendentals=transcendentals,
                                      bytes_accessed=bytes_accessed),
    )(inputs, hidden, cell, params["w"], params["b"],
      params["fc_w"], params["fc_b"])

    return preds[:, :, :output_dim], new_h, new_c


def decoder_forward(params, inp, hidden, cell, *, output_dim):
    """Equivalent of Decoder.forward(input, hidden, cell) — single step (T=1)."""
    preds, new_h, new_c = decoder_forward_seq(params, inp[None], hidden, cell,
                                              output_dim=output_dim)
    return preds[0], new_h, new_c


# ----------------------------- param init ----------------------------------- #

def init_decoder_params(key, output_dim, input_dim, hid_dim, n_layers):
    """PyTorch-style U(-1/sqrt(hid), 1/sqrt(hid)) init, packed for the kernel."""
    H = hid_dim
    d_max = max(input_dim, H)
    k = 1.0 / float(np.sqrt(hid_dim))
    w_layers, b_layers = [], []
    for layer in range(n_layers):
        din = input_dim if layer == 0 else H
        key, k1, k2, k3, k4 = jax.random.split(key, 5)
        w_ih = jax.random.uniform(k1, (4 * H, din), jnp.float32, -k, k)
        w_hh = jax.random.uniform(k2, (4 * H, H), jnp.float32, -k, k)
        b_ih = jax.random.uniform(k3, (4 * H,), jnp.float32, -k, k)
        b_hh = jax.random.uniform(k4, (4 * H,), jnp.float32, -k, k)
        # Packed pre-transposed weight: rows [0:din] = W_ih^T, [din:d_max] = 0,
        # rows [d_max:d_max+H] = W_hh^T. Gate column order stays [i,f,g,o].
        w = jnp.zeros((d_max + H, 4 * H), jnp.float32)
        w = w.at[:din, :].set(w_ih.T)
        w = w.at[d_max:, :].set(w_hh.T)
        w_layers.append(w)
        b_layers.append((b_ih + b_hh)[None, :])

    key, k5, k6 = jax.random.split(key, 3)
    fc_w = jax.random.uniform(k5, (output_dim, H), jnp.float32, -k, k)
    fc_b = jax.random.uniform(k6, (output_dim,), jnp.float32, -k, k)
    o_pad = ((output_dim + LANE - 1) // LANE) * LANE      # lane-dense head
    fc_w_pad = jnp.zeros((H, o_pad), jnp.float32).at[:, :output_dim].set(fc_w.T)
    fc_b_pad = jnp.zeros((1, o_pad), jnp.float32).at[:, :output_dim].set(fc_b[None, :])

    return {
        "w": jnp.stack(w_layers, 0).astype(jnp.bfloat16),   # (L, d_max+H, 4H)
        "b": jnp.stack(b_layers, 0),                        # (L, 1, 4H) f32
        "fc_w": fc_w_pad.astype(jnp.bfloat16),               # (H, o_pad)
        "fc_b": fc_b_pad,                                    # (1, o_pad) f32
    }


# ----------------------------- pure-JAX reference --------------------------- #

def decoder_step_reference(params, inp, hidden, cell, *, output_dim, input_dim):
    L, _, H = hidden.shape
    d_max = params["w"].shape[1] - H
    w_all = params["w"].astype(jnp.float32)
    fc_w = params["fc_w"].astype(jnp.float32)[:, :output_dim]
    fc_b = params["fc_b"][:, :output_dim]
    x = inp
    new_h, new_c = [], []
    for layer in range(L):
        din = input_dim if layer == 0 else H
        w = w_all[layer]
        gates = (jnp.dot(x, w[:din, :], precision="highest")
                 + jnp.dot(hidden[layer], w[d_max:, :], precision="highest")
                 + params["b"][layer])
        i_g = jax.nn.sigmoid(gates[:, 0 * H:1 * H])
        f_g = jax.nn.sigmoid(gates[:, 1 * H:2 * H])
        g_g = jnp.tanh(gates[:, 2 * H:3 * H])
        o_g = jax.nn.sigmoid(gates[:, 3 * H:4 * H])
        c_new = f_g * cell[layer] + i_g * g_g
        h_new = o_g * jnp.tanh(c_new)
        new_h.append(h_new)
        new_c.append(c_new)
        x = h_new
    pred = jnp.dot(x, fc_w, precision="highest") + fc_b
    return pred, jnp.stack(new_h, 0), jnp.stack(new_c, 0)


def decoder_seq_reference(params, inputs, hidden, cell, *, output_dim, input_dim):
    preds = []
    h, c = hidden, cell
    for t in range(inputs.shape[0]):
        p, h, c = decoder_step_reference(params, inputs[t], h, c,
                                         output_dim=output_dim,
                                         input_dim=input_dim)
        preds.append(p)
    return jnp.stack(preds, 0), h, c


# ----------------------------- main ------------------------------------------ #

if __name__ == "__main__":
    output_dim = 4
    input_dim = 32
    hid_dim = 32
    n_layers = 2
    batch = 8
    T = 6

    key = jax.random.PRNGKey(0)
    key, kp, ki, kh, kc = jax.random.split(key, 5)

    params = init_decoder_params(kp, output_dim, input_dim, hid_dim, n_layers)

    inputs = jax.random.normal(ki, (T, batch, input_dim), jnp.float32)
    hidden = jax.random.normal(kh, (n_layers, batch, hid_dim), jnp.float32)
    cell = jax.random.normal(kc, (n_layers, batch, hid_dim), jnp.float32)

    # --- single-step forward == Decoder.forward(input, hidden, cell) -------- #
    fwd = jax.jit(decoder_forward, static_argnames=("output_dim",))
    pred, h1, c1 = fwd(params, inputs[0], hidden, cell, output_dim=output_dim)
    jax.block_until_ready((pred, h1, c1))
    assert pred.shape == (batch, output_dim)
    assert h1.shape == (n_layers, batch, hid_dim)
    assert c1.shape == (n_layers, batch, hid_dim)

    ref_p, ref_h, ref_c = decoder_step_reference(
        params, inputs[0], hidden, cell, output_dim=output_dim,
        input_dim=input_dim)
    np.testing.assert_allclose(np.asarray(pred), np.asarray(ref_p), atol=1e-2, rtol=0)
    np.testing.assert_allclose(np.asarray(h1), np.asarray(ref_h), atol=1e-2, rtol=0)
    np.testing.assert_allclose(np.asarray(c1), np.asarray(ref_c), atol=1e-2, rtol=0)

    # --- fused T-step decode (one launch, weights VMEM-resident) ------------ #
    fwd_seq = jax.jit(decoder_forward_seq, static_argnames=("output_dim",))
    preds, hT, cT = fwd_seq(params, inputs, hidden, cell, output_dim=output_dim)
    jax.block_until_ready((preds, hT, cT))
    assert preds.shape == (T, batch, output_dim)
    assert hT.shape == (n_layers, batch, hid_dim)
    assert cT.shape == (n_layers, batch, hid_dim)

    ref_ps, ref_hT, ref_cT = decoder_seq_reference(
        params, inputs, hidden, cell, output_dim=output_dim,
        input_dim=input_dim)
    np.testing.assert_allclose(np.asarray(preds), np.asarray(ref_ps), atol=1e-2, rtol=0)
    np.testing.assert_allclose(np.asarray(hT), np.asarray(ref_hT), atol=1e-2, rtol=0)
    np.testing.assert_allclose(np.asarray(cT), np.asarray(ref_cT), atol=1e-2, rtol=0)

    print("KERNEL_OK")
</pallas_src>

<mosaic_0001>
module attributes {stable_mosaic.version = 11 : i64} {
  func.func @_decoder_seq_kernel(%arg0: i32, %arg1: memref<1x8x32xf32, #tpu.memory_space<vmem>>, %arg2: memref<2x8x32xf32, #tpu.memory_space<vmem>>, %arg3: memref<2x8x32xf32, #tpu.memory_space<vmem>>, %arg4: memref<2x64x128xbf16, #tpu.memory_space<vmem>>, %arg5: memref<2x1x128xf32, #tpu.memory_space<vmem>>, %arg6: memref<32x128xbf16, #tpu.memory_space<vmem>>, %arg7: memref<1x128xf32, #tpu.memory_space<vmem>>, %arg8: memref<1x8x128xf32, #tpu.memory_space<vmem>>, %arg9: memref<2x8x32xf32, #tpu.memory_space<vmem>>, %arg10: memref<2x8x32xf32, #tpu.memory_space<vmem>>, %arg11: memref<8x64xf32, #tpu.memory_space<vmem>>) attributes {dimension_semantics = [#tpu.dimension_semantics<arbitrary>], iteration_bounds = array<i64: 1>, scalar_prefetch = 0 : i64, scratch_operands = 1 : i64, tpu.core_type = #tpu.core_type<tc>, window_params = [{transform_indices = @transform_0, window_bounds = array<i64: 1, 8, 32>}, {pipeline_mode = #tpu.pipeline_mode<synchronous>, transform_indices = @transform_1, window_bounds = array<i64: 2, 8, 32>}, {pipeline_mode = #tpu.pipeline_mode<synchronous>, transform_indices = @transform_2, window_bounds = array<i64: 2, 8, 32>}, {pipeline_mode = #tpu.pipeline_mode<synchronous>, transform_indices = @transform_3, window_bounds = array<i64: 2, 64, 128>}, {pipeline_mode = #tpu.pipeline_mode<synchronous>, transform_indices = @transform_4, window_bounds = array<i64: 2, 1, 128>}, {pipeline_mode = #tpu.pipeline_mode<synchronous>, transform_indices = @transform_5, window_bounds = array<i64: 32, 128>}, {pipeline_mode = #tpu.pipeline_mode<synchronous>, transform_indices = @transform_6, window_bounds = array<i64: 1, 128>}, {transform_indices = @transform_7, window_bounds = array<i64: 1, 8, 128>}, {pipeline_mode = #tpu.pipeline_mode<synchronous>, transform_indices = @transform_8, window_bounds = array<i64: 2, 8, 32>}, {pipeline_mode = #tpu.pipeline_mode<synchronous>, transform_indices = @transform_9, window_bounds = array<i64: 2, 8, 32>}]} {
    %c0_i32 = arith.constant 0 : i32
    %0 = arith.cmpi eq, %arg0, %c0_i32 : i32
    %1 = arith.extui %0 : i1 to i32
    %c0_i32_0 = arith.constant 0 : i32
    %2 = arith.cmpi ne, %1, %c0_i32_0 : i32
    scf.if %2 {
      %cst_64 = arith.constant 0.000000e+00 : f32
      %106 = vector.broadcast %cst_64 : f32 to vector<8x64xf32>
      %c0_65 = arith.constant 0 : index
      %c0_66 = arith.constant 0 : index
      %107 = vector.load %arg11[%c0_65, %c0_66] : memref<8x64xf32, #tpu.memory_space<vmem>>, vector<8x64xf32>
      tpu.vector_store %arg11[%c0_65, %c0_66], %106 {strides = array<i32>} : memref<8x64xf32, #tpu.memory_space<vmem>>, vector<8x64xf32>,
      %c0_67 = arith.constant 0 : index
      %c0_68 = arith.constant 0 : index
      %c0_69 = arith.constant 0 : index
      %108 = vector.load %arg2[%c0_67, %c0_68, %c0_69] : memref<2x8x32xf32, #tpu.memory_space<vmem>>, vector<2x8x32xf32>
      %c0_70 = arith.constant 0 : index
      %c0_71 = arith.constant 0 : index
      %c0_72 = arith.constant 0 : index
      %109 = vector.load %arg9[%c0_70, %c0_71, %c0_72] : memref<2x8x32xf32, #tpu.memory_space<vmem>>, vector<2x8x32xf32>
      tpu.vector_store %arg9[%c0_70, %c0_71, %c0_72], %108 {strides = array<i32>} : memref<2x8x32xf32, #tpu.memory_space<vmem>>, vector<2x8x32xf32>,
      %c0_73 = arith.constant 0 : index
      %c0_74 = arith.constant 0 : index
      %c0_75 = arith.constant 0 : index
      %110 = vector.load %arg3[%c0_73, %c0_74, %c0_75] : memref<2x8x32xf32, #tpu.memory_space<vmem>>, vector<2x8x32xf32>
      %c0_76 = arith.constant 0 : index
      %c0_77 = arith.constant 0 : index
      %c0_78 = arith.constant 0 : index
      %111 = vector.load %arg10[%c0_76, %c0_77, %c0_78] : memref<2x8x32xf32, #tpu.memory_space<vmem>>, vector<2x8x32xf32>
      tpu.vector_store %arg10[%c0_76, %c0_77, %c0_78], %110 {strides = array<i32>} : memref<2x8x32xf32, #tpu.memory_space<vmem>>, vector<2x8x32xf32>,
    } else {
    }
    %c0 = arith.constant 0 : index
    %c0_1 = arith.constant 0 : index
    %c0_2 = arith.constant 0 : index
    %3 = vector.load %arg1[%c0, %c0_1, %c0_2] : memref<1x8x32xf32, #tpu.memory_space<vmem>>, vector<1x8x32xf32>
    %4 = vector.shape_cast %3 : vector<1x8x32xf32> to vector<8x32xf32>
    %c0_3 = arith.constant 0 : index
    %c0_4 = arith.constant 0 : index
    %5 = vector.load %arg11[%c0_3, %c0_4] : memref<8x64xf32, #tpu.memory_space<vmem>>, vector<8x32xf32>
    tpu.vector_store %arg11[%c0_3, %c0_4], %4 {strides = array<i32>} : memref<8x64xf32, #tpu.memory_space<vmem>>, vector<8x32xf32>,
    %c0_5 = arith.constant 0 : index
    %c0_6 = arith.constant 0 : index
    %c0_7 = arith.constant 0 : index
    %6 = vector.load %arg9[%c0_5, %c0_6, %c0_7] : memref<2x8x32xf32, #tpu.memory_space<vmem>>, vector<1x8x32xf32>
    %7 = vector.shape_cast %6 : vector<1x8x32xf32> to vector<8x32xf32>
    %c0_8 = arith.constant 0 : index
    %c32 = arith.constant 32 : index
    %8 = vector.load %arg11[%c0_8, %c32] : memref<8x64xf32, #tpu.memory_space<vmem>>, vector<8x32xf32>
    tpu.vector_store %arg11[%c0_8, %c32], %7 {strides = array<i32>} : memref<8x64xf32, #tpu.memory_space<vmem>>, vector<8x32xf32>,
    %c0_9 = arith.constant 0 : index
    %c0_10 = arith.constant 0 : index
    %9 = vector.load %arg11[%c0_9, %c0_10] : memref<8x64xf32, #tpu.memory_space<vmem>>, vector<8x64xf32>
    %10 = arith.truncf %9 : vector<8x64xf32> to vector<8x64xbf16>
    %c0_11 = arith.constant 0 : index
    %c0_12 = arith.constant 0 : index
    %c0_13 = arith.constant 0 : index
    %11 = vector.load %arg4[%c0_11, %c0_12, %c0_13] : memref<2x64x128xbf16, #tpu.memory_space<vmem>>, vector<1x64x128xbf16>
    %12 = vector.shape_cast %11 : vector<1x64x128xbf16> to vector<64x128xbf16>
    %cst = arith.constant dense<0.000000e+00> : vector<8x128xf32>
    %13 = tpu.matmul %10, %12, %cst {dimension_numbers = #tpu.dot_dimension_numbers<[1], [0], [0], [1], [0, 0, 1, 1], [], []>} : vector<8x64xbf16>, vector<64x128xbf16>, vector<8x128xf32> -> vector<8x128xf32>
    %c0_14 = arith.constant 0 : index
    %c0_15 = arith.constant 0 : index
    %c0_16 = arith.constant 0 : index
    %14 = vector.load %arg5[%c0_14, %c0_15, %c0_16] : memref<2x1x128xf32, #tpu.memory_space<vmem>>, vector<1x1x128xf32>
    %15 = vector.shape_cast %14 : vector<1x1x128xf32> to vector<1x128xf32>
    %16 = vector.broadcast %15 : vector<1x128xf32> to vector<8x128xf32>
    %17 = arith.addf %13, %16 : vector<8x128xf32>
    %18 = vector.extract_strided_slice %17 {offsets = [0, 0], sizes = [8, 32], strides = [1, 1]} : vector<8x128xf32> to vector<8x32xf32>
    %19 = arith.negf %18 : vector<8x32xf32>
    %20 = math.exp %19 : vector<8x32xf32>
    %cst_17 = arith.constant 1.000000e+00 : f32
    %21 = vector.broadcast %cst_17 : f32 to vector<8x32xf32>
    %22 = arith.addf %21, %20 : vector<8x32xf32>
    %23 = arith.divf %21, %22 : vector<8x32xf32>
    %24 = vector.extract_strided_slice %17 {offsets = [0, 32], sizes = [8, 32], strides = [1, 1]} : vector<8x128xf32> to vector<8x32xf32>
    %25 = arith.negf %24 : vector<8x32xf32>
    %26 = math.exp %25 : vector<8x32xf32>
    %cst_18 = arith.constant 1.000000e+00 : f32
    %27 = vector.broadcast %cst_18 : f32 to vector<8x32xf32>
    %28 = arith.addf %27, %26 : vector<8x32xf32>
    %29 = arith.divf %27, %28 : vector<8x32xf32>
    %30 = vector.extract_strided_slice %17 {offsets = [0, 64], sizes = [8, 32], strides = [1, 1]} : vector<8x128xf32> to vector<8x32xf32>
    %31 = math.tanh %30 : vector<8x32xf32>
    %32 = vector.extract_strided_slice %17 {offsets = [0, 96], sizes = [8, 32], strides = [1, 1]} : vector<8x128xf32> to vector<8x32xf32>
    %33 = arith.negf %32 : vector<8x32xf32>
    %34 = math.exp %33 : vector<8x32xf32>
    %cst_19 = arith.constant 1.000000e+00 : f32
    %35 = vector.broadcast %cst_19 : f32 to vector<8x32xf32>
    %36 = arith.addf %35, %34 : vector<8x32xf32>
    %37 = arith.divf %35, %36 : vector<8x32xf32>
    %c0_20 = arith.constant 0 : index
    %c0_21 = arith.constant 0 : index
    %c0_22 = arith.constant 0 : index
    %38 = vector.load %arg10[%c0_20, %c0_21, %c0_22] : memref<2x8x32xf32, #tpu.memory_space<vmem>>, vector<1x8x32xf32>
    %39 = vector.shape_cast %38 : vector<1x8x32xf32> to vector<8x32xf32>
    %40 = arith.mulf %29, %39 : vector<8x32xf32>
    %41 = arith.mulf %23, %31 : vector<8x32xf32>
    %42 = arith.addf %40, %41 : vector<8x32xf32>
    %43 = math.tanh %42 : vector<8x32xf32>
    %44 = arith.mulf %37, %43 : vector<8x32xf32>
    %c0_23 = arith.constant 0 : index
    %c0_24 = arith.constant 0 : index
    %c0_25 = arith.constant 0 : index
    %45 = vector.load %arg9[%c0_23, %c0_24, %c0_25] : memref<2x8x32xf32, #tpu.memory_space<vmem>>, vector<1x8x32xf32>
    %46 = vector.shape_cast %45 : vector<1x8x32xf32> to vector<8x32xf32>
    %47 = vector.shape_cast %44 : vector<8x32xf32> to vector<1x8x32xf32>
    tpu.vector_store %arg9[%c0_23, %c0_24, %c0_25], %47 {strides = array<i32>} : memref<2x8x32xf32, #tpu.memory_space<vmem>>, vector<1x8x32xf32>,
    %c0_26 = arith.constant 0 : index
    %c0_27 = arith.constant 0 : index
    %c0_28 = arith.constant 0 : index
    %48 = vector.load %arg10[%c0_26, %c0_27, %c0_28] : memref<2x8x32xf32, #tpu.memory_space<vmem>>, vector<1x8x32xf32>
    %49 = vector.shape_cast %48 : vector<1x8x32xf32> to vector<8x32xf32>
    %50 = vector.shape_cast %42 : vector<8x32xf32> to vector<1x8x32xf32>
    tpu.vector_store %arg10[%c0_26, %c0_27, %c0_28], %50 {strides = array<i32>} : memref<2x8x32xf32, #tpu.memory_space<vmem>>, vector<1x8x32xf32>,
    %c0_29 = arith.constant 0 : index
    %c0_30 = arith.constant 0 : index
    %51 = vector.load %arg11[%c0_29, %c0_30] : memref<8x64xf32, #tpu.memory_space<vmem>>, vector<8x32xf32>
    tpu.vector_store %arg11[%c0_29, %c0_30], %44 {strides = array<i32>} : memref<8x64xf32, #tpu.memory_space<vmem>>, vector<8x32xf32>,
    %c1 = arith.constant 1 : index
    %c0_31 = arith.constant 0 : index
    %c0_32 = arith.constant 0 : index
    %52 = vector.load %arg9[%c1, %c0_31, %c0_32] : memref<2x8x32xf32, #tpu.memory_space<vmem>>, vector<1x8x32xf32>
    %53 = vector.shape_cast %52 : vector<1x8x32xf32> to vector<8x32xf32>
    %c0_33 = arith.constant 0 : index
    %c32_34 = arith.constant 32 : index
    %54 = vector.load %arg11[%c0_33, %c32_34] : memref<8x64xf32, #tpu.memory_space<vmem>>, vector<8x32xf32>
    tpu.vector_store %arg11[%c0_33, %c32_34], %53 {strides = array<i32>} : memref<8x64xf32, #tpu.memory_space<vmem>>, vector<8x32xf32>,
    %c0_35 = arith.constant 0 : index
    %c0_36 = arith.constant 0 : index
    %55 = vector.load %arg11[%c0_35, %c0_36] : memref<8x64xf32, #tpu.memory_space<vmem>>, vector<8x64xf32>
    %56 = arith.truncf %55 : vector<8x64xf32> to vector<8x64xbf16>
    %c1_37 = arith.constant 1 : index
    %c0_38 = arith.constant 0 : index
    %c0_39 = arith.constant 0 : index
    %57 = vector.load %arg4[%c1_37, %c0_38, %c0_39] : memref<2x64x128xbf16, #tpu.memory_space<vmem>>, vector<1x64x128xbf16>
    %58 = vector.shape_cast %57 : vector<1x64x128xbf16> to vector<64x128xbf16>
    %cst_40 = arith.constant dense<0.000000e+00> : vector<8x128xf32>
    %59 = tpu.matmul %56, %58, %cst_40 {dimension_numbers = #tpu.dot_dimension_numbers<[1], [0], [0], [1], [0, 0, 1, 1], [], []>} : vector<8x64xbf16>, vector<64x128xbf16>, vector<8x128xf32> -> vector<8x128xf32>
    %c1_41 = arith.constant 1 : index
    %c0_42 = arith.constant 0 : index
    %c0_43 = arith.constant 0 : index
    %60 = vector.load %arg5[%c1_41, %c0_42, %c0_43] : memref<2x1x128xf32, #tpu.memory_space<vmem>>, vector<1x1x128xf32>
    %61 = vector.shape_cast %60 : vector<1x1x128xf32> to vector<1x128xf32>
    %62 = vector.broadcast %61 : vector<1x128xf32> to vector<8x128xf32>
    %63 = arith.addf %59, %62 : vector<8x128xf32>
    %64 = vector.extract_strided_slice %63 {offsets = [0, 0], sizes = [8, 32], strides = [1, 1]} : vector<8x128xf32> to vector<8x32xf32>
    %65 = arith.negf %64 : vector<8x32xf32>
    %66 = math.exp %65 : vector<8x32xf32>
    %cst_44 = arith.constant 1.000000e+00 : f32
    %67 = vector.broadcast %cst_44 : f32 to vector<8x32xf32>
    %68 = arith.addf %67, %66 : vector<8x32xf32>
    %69 = arith.divf %67, %68 : vector<8x32xf32>
    %70 = vector.extract_strided_slice %63 {offsets = [0, 32], sizes = [8, 32], strides = [1, 1]} : vector<8x128xf32> to vector<8x32xf32>
    %71 = arith.negf %70 : vector<8x32xf32>
    %72 = math.exp %71 : vector<8x32xf32>
    %cst_45 = arith.constant 1.000000e+00 : f32
    %73 = vector.broadcast %cst_45 : f32 to vector<8x32xf32>
    %74 = arith.addf %73, %72 : vector<8x32xf32>
    %75 = arith.divf %73, %74 : vector<8x32xf32>
    %76 = vector.extract_strided_slice %63 {offsets = [0, 64], sizes = [8, 32], strides = [1, 1]} : vector<8x128xf32> to vector<8x32xf32>
    %77 = math.tanh %76 : vector<8x32xf32>
    %78 = vector.extract_strided_slice %63 {offsets = [0, 96], sizes = [8, 32], strides = [1, 1]} : vector<8x128xf32> to vector<8x32xf32>
    %79 = arith.negf %78 : vector<8x32xf32>
    %80 = math.exp %79 : vector<8x32xf32>
    %cst_46 = arith.constant 1.000000e+00 : f32
    %81 = vector.broadcast %cst_46 : f32 to vector<8x32xf32>
    %82 = arith.addf %81, %80 : vector<8x32xf32>
    %83 = arith.divf %81, %82 : vector<8x32xf32>
    %c1_47 = arith.constant 1 : index
    %c0_48 = arith.constant 0 : index
    %c0_49 = arith.constant 0 : index
    %84 = vector.load %arg10[%c1_47, %c0_48, %c0_49] : memref<2x8x32xf32, #tpu.memory_space<vmem>>, vector<1x8x32xf32>
    %85 = vector.shape_cast %84 : vector<1x8x32xf32> to vector<8x32xf32>
    %86 = arith.mulf %75, %85 : vector<8x32xf32>
    %87 = arith.mulf %69, %77 : vector<8x32xf32>
    %88 = arith.addf %86, %87 : vector<8x32xf32>
    %89 = math.tanh %88 : vector<8x32xf32>
    %90 = arith.mulf %83, %89 : vector<8x32xf32>
    %c1_50 = arith.constant 1 : index
    %c0_51 = arith.constant 0 : index
    %c0_52 = arith.constant 0 : index
    %91 = vector.load %arg9[%c1_50, %c0_51, %c0_52] : memref<2x8x32xf32, #tpu.memory_space<vmem>>, vector<1x8x32xf32>
    %92 = vector.shape_cast %91 : vector<1x8x32xf32> to vector<8x32xf32>
    %93 = vector.shape_cast %90 : vector<8x32xf32> to vector<1x8x32xf32>
    tpu.vector_store %arg9[%c1_50, %c0_51, %c0_52], %93 {strides = array<i32>} : memref<2x8x32xf32, #tpu.memory_space<vmem>>, vector<1x8x32xf32>,
    %c1_53 = arith.constant 1 : index
    %c0_54 = arith.constant 0 : index
    %c0_55 = arith.constant 0 : index
    %94 = vector.load %arg10[%c1_53, %c0_54, %c0_55] : memref<2x8x32xf32, #tpu.memory_space<vmem>>, vector<1x8x32xf32>
    %95 = vector.shape_cast %94 : vector<1x8x32xf32> to vector<8x32xf32>
    %96 = vector.shape_cast %88 : vector<8x32xf32> to vector<1x8x32xf32>
    tpu.vector_store %arg10[%c1_53, %c0_54, %c0_55], %96 {strides = array<i32>} : memref<2x8x32xf32, #tpu.memory_space<vmem>>, vector<1x8x32xf32>,
    %97 = arith.truncf %90 : vector<8x32xf32> to vector<8x32xbf16>
    %c0_56 = arith.constant 0 : index
    %c0_57 = arith.constant 0 : index
    %98 = vector.load %arg6[%c0_56, %c0_57] : memref<32x128xbf16, #tpu.memory_space<vmem>>, vector<32x128xbf16>
    %cst_58 = arith.constant dense<0.000000e+00> : vector<8x128xf32>
    %99 = tpu.matmul %97, %98, %cst_58 {dimension_numbers = #tpu.dot_dimension_numbers<[1], [0], [0], [1], [0, 0, 1, 1], [], []>} : vector<8x32xbf16>, vector<32x128xbf16>, vector<8x128xf32> -> vector<8x128xf32>
    %c0_59 = arith.constant 0 : index
    %c0_60 = arith.constant 0 : index
    %100 = vector.load %arg7[%c0_59, %c0_60] : memref<1x128xf32, #tpu.memory_space<vmem>>, vector<1x128xf32>
    %101 = vector.broadcast %100 : vector<1x128xf32> to vector<8x128xf32>
    %102 = arith.addf %99, %101 : vector<8x128xf32>
    %c0_61 = arith.constant 0 : index
    %c0_62 = arith.constant 0 : index
    %c0_63 = arith.constant 0 : index
    %103 = vector.load %arg8[%c0_61, %c0_62, %c0_63] : memref<1x8x128xf32, #tpu.memory_space<vmem>>, vector<1x8x128xf32>
    %104 = vector.shape_cast %103 : vector<1x8x128xf32> to vector<8x128xf32>
    %105 = vector.shape_cast %102 : vector<8x128xf32> to vector<1x8x128xf32>
    tpu.vector_store %arg8[%c0_61, %c0_62, %c0_63], %105 {strides = array<i32>} : memref<1x8x128xf32, #tpu.memory_space<vmem>>, vector<1x8x128xf32>,
    return
  }
  func.func @transform_0(%arg0: i32) -> (i32, i32, i32) {
    %c0_i32 = arith.constant 0 : i32
    %c0_i32_0 = arith.constant 0 : i32
    %c0_i32_1 = arith.constant 0 : i32
    return %arg0, %c0_i32, %c0_i32_0 : i32, i32, i32
  }
  func.func @transform_1(%arg0: i32) -> (i32, i32, i32) {
    %c0_i32 = arith.constant 0 : i32
    %c0_i32_0 = arith.constant 0 : i32
    %c0_i32_1 = arith.constant 0 : i32
    %c0_i32_2 = arith.constant 0 : i32
    return %c0_i32, %c0_i32_0, %c0_i32_1 : i32, i32, i32
  }
  func.func @transform_2(%arg0: i32) -> (i32, i32, i32) {
    %c0_i32 = arith.constant 0 : i32
    %c0_i32_0 = arith.constant 0 : i32
    %c0_i32_1 = arith.constant 0 : i32
    %c0_i32_2 = arith.constant 0 : i32
    return %c0_i32, %c0_i32_0, %c0_i32_1 : i32, i32, i32
  }
  func.func @transform_3(%arg0: i32) -> (i32, i32, i32) {
    %c0_i32 = arith.constant 0 : i32
    %c0_i32_0 = arith.constant 0 : i32
    %c0_i32_1 = arith.constant 0 : i32
    %c0_i32_2 = arith.constant 0 : i32
    return %c0_i32, %c0_i32_0, %c0_i32_1 : i32, i32, i32
  }
  func.func @transform_4(%arg0: i32) -> (i32, i32, i32) {
    %c0_i32 = arith.constant 0 : i32
    %c0_i32_0 = arith.constant 0 : i32
    %c0_i32_1 = arith.constant 0 : i32
    %c0_i32_2 = arith.constant 0 : i32
    return %c0_i32, %c0_i32_0, %c0_i32_1 : i32, i32, i32
  }
  func.func @transform_5(%arg0: i32) -> (i32, i32) {
    %c0_i32 = arith.constant 0 : i32
    %c0_i32_0 = arith.constant 0 : i32
    %c0_i32_1 = arith.constant 0 : i32
    return %c0_i32, %c0_i32_0 : i32, i32
  }
  func.func @transform_6(%arg0: i32) -> (i32, i32) {
    %c0_i32 = arith.constant 0 : i32
    %c0_i32_0 = arith.constant 0 : i32
    %c0_i32_1 = arith.constant 0 : i32
    return %c0_i32, %c0_i32_0 : i32, i32
  }
  func.func @transform_7(%arg0: i32) -> (i32, i32, i32) {
    %c0_i32 = arith.constant 0 : i32
    %c0_i32_0 = arith.constant 0 : i32
    %c0_i32_1 = arith.constant 0 : i32
    return %arg0, %c0_i32, %c0_i32_0 : i32, i32, i32
  }
  func.func @transform_8(%arg0: i32) -> (i32, i32, i32) {
    %c0_i32 = arith.constant 0 : i32
    %c0_i32_0 = arith.constant 0 : i32
    %c0_i32_1 = arith.constant 0 : i32
    %c0_i32_2 = arith.constant 0 : i32
    return %c0_i32, %c0_i32_0, %c0_i32_1 : i32, i32, i32
  }
  func.func @transform_9(%arg0: i32) -> (i32, i32, i32) {
    %c0_i32 = arith.constant 0 : i32
    %c0_i32_0 = arith.constant 0 : i32
    %c0_i32_1 = arith.constant 0 : i32
    %c0_i32_2 = arith.constant 0 : i32
    return %c0_i32, %c0_i32_0, %c0_i32_1 : i32, i32, i32
  }
}

</mosaic_0001>

<llo_original>
// kernel: decoder_forward.1
$region0: #{decoder_forward.1}
  #allocation0 [shape = 'u32[]', space=smem, size = 0x4, offset = 0x4, fixed_abs, tag = 'smem constant byte address 0x4 - core index']
  #allocation1 [shape = 'u32[144,128]{1,0:T(1,128)}', space=vmem, size = 0x12000, scoped, tag = 'internal scratch']
  #allocation2 [shape = 'f32[8,64]{1,0:T(8,128)}', space=vmem, size = 0x1000, scoped, tag = 'scratch operand']
  %s0 = inlined_call_operand.hbm [shape: f32[1,8,32], index: 0, kind: input, shape index: {}]
  %s1 = inlined_call_operand.vmem [shape: f32[2,8,32], index: 1, kind: input, shape index: {}]
  %s2 = inlined_call_operand.hbm [shape: f32[2,8,32], index: 2, kind: input, shape index: {}]
  %s3 = inlined_call_operand.hbm [shape: bf16[2,64,128], index: 3, kind: input, shape index: {}]
  %s4 = inlined_call_operand.vmem [shape: f32[2,1,128], index: 4, kind: input, shape index: {}]
  %s5 = inlined_call_operand.hbm [shape: bf16[32,128], index: 5, kind: input, shape index: {}]
  %s6 = inlined_call_operand.vmem [shape: f32[1,128], index: 6, kind: input, shape index: {}]
  %s7 = inlined_call_operand.vmem [shape: f32[1,8,128], index: 7, kind: output, shape index: {0}]
  %s8 = inlined_call_operand.hbm [shape: f32[2,8,32], index: 8, kind: output, shape index: {1}]
  %s9 = inlined_call_operand.hbm [shape: f32[2,8,32], index: 9, kind: output, shape index: {2}]
  %10 = xla_tuple %s7, %s8, %s9
  %s11 = sld [smem:[#allocation0]]
  $region74: #{decoder_forward.1} parent=0
    _
  %s13 = ssub.s32 1, %s11
  %s14 = scalar_select 0, %s13, %s11
  $region1: #{decoder_forward.1} parent=0
    #allocation3 [shape = 'u8[4096]{0}', space=vmem, size = 0x1000, scoped, tag = 'input window, operand 0, single buffered']
    #allocation4 [shape = 's32[1]{0}', space=sflag, size = 0x4, scoped, tag = 'scoped memory for decoder_forward.1']
    #allocation5 [shape = 's32[1]{0}', space=sflag, size = 0x4, scoped, tag = 'scoped memory for decoder_forward.1']
    #allocation6 [shape = 'u8[8192]{0}', space=vmem, size = 0x2000, scoped, tag = 'input window, operand 2, single buffered']
    #allocation7 [shape = 's32[1]{0}', space=sflag, size = 0x4, scoped, tag = 'scoped memory for decoder_forward.1']
    #allocation8 [shape = 'u8[32768]{0}', space=vmem, size = 0x8000, scoped, tag = 'input window, operand 3, single buffered']
    #allocation9 [shape = 'u8[8192]{0}', space=vmem, size = 0x2000, scoped, tag = 'input window, operand 5, single buffered']
    #allocation10 [shape = 's32[1]{0}', space=sflag, size = 0x4, scoped, tag = 'scoped memory for decoder_forward.1']
    #allocation11 [shape = 'u8[8192]{0}', space=vmem, size = 0x2000, scoped, tag = 'output window, operand 1, single buffered']
    #allocation12 [shape = 'u8[8192]{0}', space=vmem, size = 0x2000, scoped, tag = 'output window, operand 2, single buffered']
    #allocation13 [shape = 's32[1]{0}', space=sflag, size = 0x4, scoped, tag = 'scoped memory for decoder_forward.1']
    %15 = vsyncpa [#allocation4], 0
    %16 = vsyncpa [#allocation7], 0
    %17 = vsyncpa [#allocation10], 0
    %18 = vsyncpa [#allocation5], 0
    %19 = vsyncpa [#allocation13], 0
    // Predicated region
    $region2: #{decoder_forward.1} parent=1 // pred_check
      _
    $region3: #{decoder_forward.1} parent=1 // pred_check_branch
      %21 = sbr.rel (0) target = $region5
    $region4: #{decoder_forward.1} parent=1 // pred_region
      %s23 = ssub.s32 128, 128
      %24 = vsyncadd [#allocation4], %s23
      %s26 = sshll.u32 [#allocation3], 4
      %s27 = int_to_ptr.vmem [resolvable:$true] %s26
      %29 = dma.hbm_to_vmem [thread:$0]  %s0, 128, %s27, [#allocation4]
    $region5: #{decoder_forward.1} parent=1 // pred_fallthru
      _
    // Predicated region
    $region6: #{decoder_forward.1} parent=1 // pred_check
      _
    $region7: #{decoder_forward.1} parent=1 // pred_check_branch
      %31 = sbr.rel (0) target = $region9
    $region8: #{decoder_forward.1} parent=1 // pred_region
      _
    $region9: #{decoder_forward.1} parent=1 // pred_fallthru
      _
    // Predicated region
    $region10: #{decoder_forward.1} parent=1 // pred_check
      _
    $region11: #{decoder_forward.1} parent=1 // pred_check_branch
      %33 = sbr.rel (0) target = $region13
    $region12: #{decoder_forward.1} parent=1 // pred_region
      %s35 = ssub.s32 256, 256
      %36 = vsyncadd [#allocation7], %s35
      %s37 = sshll.u32 [#allocation6], 4
      %s38 = int_to_ptr.vmem [resolvable:$true] %s37
      %43 = dma.hbm_to_vmem [thread:$0]  %s2, 256, %s38, [#allocation7], 128, 128, 8
    $region13: #{decoder_forward.1} parent=1 // pred_fallthru
      _
    // Predicated region
    $region14: #{decoder_forward.1} parent=1 // pred_check
      _
    $region15: #{decoder_forward.1} parent=1 // pred_check_branch
      %45 = sbr.rel (0) target = $region17
    $region16: #{decoder_forward.1} parent=1 // pred_region
      %s47 = ssub.s32 1024, 1024
      %48 = vsyncadd [#allocation7], %s47
      %s49 = sshll.u32 [#allocation8], 4
      %s50 = int_to_ptr.vmem [resolvable:$true] %s49
      %55 = dma.hbm_to_vmem [thread:$0]  %s3, 1024, %s50, [#allocation7], 64, 64, 4
    $region17: #{decoder_forward.1} parent=1 // pred_fallthru
      _
    // Predicated region
    $region18: #{decoder_forward.1} parent=1 // pred_check
      _
    $region19: #{decoder_forward.1} parent=1 // pred_check_branch
      %57 = sbr.rel (0) target = $region21
    $region20: #{decoder_forward.1} parent=1 // pred_region
      _
    $region21: #{decoder_forward.1} parent=1 // pred_fallthru
      _
    // Predicated region
    $region22: #{decoder_forward.1} parent=1 // pred_check
      _
    $region23: #{decoder_forward.1} parent=1 // pred_check_branch
      %59 = sbr.rel (0) target = $region25
    $region24: #{decoder_forward.1} parent=1 // pred_region
      %s61 = ssub.s32 256, 256
      %62 = vsyncadd [#allocation10], %s61
      %s63 = sshll.u32 [#allocation9], 4
      %s64 = int_to_ptr.vmem [resolvable:$true] %s63
      %69 = dma.hbm_to_vmem [thread:$0]  %s5, 256, %s64, [#allocation10], 64, 64, 4
    $region25: #{decoder_forward.1} parent=1 // pred_fallthru
      _
    // Predicated region
    $region26: #{decoder_forward.1} parent=1 // pred_check
      _
    $region27: #{decoder_forward.1} parent=1 // pred_check_branch
      %71 = sbr.rel (0) target = $region29
    $region28: #{decoder_forward.1} parent=1 // pred_region
      _
    $region29: #{decoder_forward.1} parent=1 // pred_fallthru
      _
    // Predicated region
    $region30: #{decoder_forward.1} parent=1 // pred_check
      _
    $region31: #{decoder_forward.1} parent=1 // pred_check_branch
      %73 = sbr.rel (0) target = $region33
    $region32: #{decoder_forward.1} parent=1 // pred_region
      %74 = dma.done [#allocation4], 128
    $region33: #{decoder_forward.1} parent=1 // pred_fallthru
      _
    // Predicated region
    $region34: #{decoder_forward.1} parent=1 // pred_check
      _
    $region35: #{decoder_forward.1} parent=1 // pred_check_branch
      %76 = sbr.rel (0) target = $region37
    $region36: #{decoder_forward.1} parent=1 // pred_region
      %77 = dma.done [#allocation7], 256
    $region37: #{decoder_forward.1} parent=1 // pred_fallthru
      _
    // Predicated region
    $region38: #{decoder_forward.1} parent=1 // pred_check
      _
    $region39: #{decoder_forward.1} parent=1 // pred_check_branch
      %79 = sbr.rel (0) target = $region41
    $region40: #{decoder_forward.1} parent=1 // pred_region
      %80 = dma.done [#allocation7], 1024
    $region41: #{decoder_forward.1} parent=1 // pred_fallthru
      _
    // Predicated region
    $region42: #{decoder_forward.1} parent=1 // pred_check
      _
    $region43: #{decoder_forward.1} parent=1 // pred_check_branch
      %82 = sbr.rel (0) target = $region45
    $region44: #{decoder_forward.1} parent=1 // pred_region
      %83 = dma.done [#allocation10], 256
    $region45: #{decoder_forward.1} parent=1 // pred_fallthru
      _
    %p85 = scmp.eq.s32.totalorder 0, 0
    // Predicated region
    $region46: #{decoder_forward.1} parent=1 // pred_check
      %p86 = pneg %p85
    $region47: #{decoder_forward.1} parent=1 // pred_check_branch
      %88 = sbr.rel (%p86) target = $region49
    $region48: #{decoder_forward.1} parent=1 // pred_region
      %vm89 = vcmask 523264
      %90 = vst.msk [vmem:[#allocation2] sm:$0xff] %vm89, 0.0
      %v91 = vld [vmem:[%s1] sm:$0xff]
      %v92 = vld [vmem:[%s1 + $0x8] sm:$0xff]
      %vm93 = vcmask 261120
      %94 = vst.msk [vmem:[#allocation11] sm:$0xff] %vm93, %v91
      %95 = vst.msk [vmem:[#allocation11 + $0x8] sm:$0xff] %vm93, %v92
      %v96 = vld [vmem:[#allocation6] sm:$0xff]
      %v97 = vld [vmem:[#allocation6 + $0x8] sm:$0xff]
      %98 = vst.msk [vmem:[#allocation12] sm:$0xff] %vm93, %v96
      %99 = vst.msk [vmem:[#allocation12 + $0x8] sm:$0xff] %vm93, %v97
    $region49: #{decoder_forward.1} parent=1 // pred_fallthru
      _
    %v100 = vld [vmem:[#allocation3] sm:$0xff]
    %vm101 = vcmask 261120
    %102 = vst.msk [vmem:[#allocation2] sm:$0xff] %vm101, %v100
    %v103 = vld [vmem:[#allocation11] sm:$0xff]
    %105 = vrot.lane.b32.xlu0 %v103, 32
    %v106 = vpop.permute.xlu0 %105
    %vm108 = vcmask 523520
    %109 = vst.msk [vmem:[#allocation2] sm:$0xff] %vm108, %v106
    %v110 = vld [vmem:[#allocation2] sm:$0xff]
    %v111 = vpack.c.bf16 %v110, %v110
    %v112 = vld [vmem:[#allocation8] sm:$0xf]
    %v113 = vld [vmem:[#allocation8 + $0x4] sm:$0xf]
    %v114 = vld [vmem:[#allocation8 + $0x8] sm:$0xf]
    %v115 = vld [vmem:[#allocation8 + $0xc] sm:$0xf]
    %v116 = vld [vmem:[#allocation8 + $0x10] sm:$0xf]
    %v117 = vld [vmem:[#allocation8 + $0x14] sm:$0xf]
    %v118 = vld [vmem:[#allocation8 + $0x18] sm:$0xf]
    %v119 = vld [vmem:[#allocation8 + $0x1c] sm:$0xf]
    %v120 = vld [vmem:[%s4] sm:$0x1]
    %v122 = vlaneseq
    %v123 = vshrl.u32 %v122, 7
    %v124 = vsub.s32 0, %v123
    %v125 = vrot.slane %v120, %v124
    %v135 = vunpack.c.l.b16 %v112
    %v136 = vunpack.c.l.b16 %v113
    %v137 = vunpack.c.l.b16 %v114
    %v138 = vunpack.c.l.b16 %v115
    %v139 = vunpack.c.l.b16 %v116
    %v140 = vunpack.c.l.b16 %v117
    %v141 = vunpack.c.l.b16 %v118
    %v142 = vunpack.c.l.b16 %v119
    %v143 = vpack.c.b16 %v136, %v135
    %v144 = vpack.c.b16 %v138, %v137
    %v145 = vpack.c.b16 %v140, %v139
    %v146 = vpack.c.b16 %v142, %v141
    %vm151 = vcmask 523264
    %v153 = vsel %vm151, %v111, 0
    %155 = vmatprep.subr.bf16.mxu0 0
    %156 = vmatpush1.bf16.msra.mxu0 %v143
    %157 = vmatprep.subr.bf16.mxu0 0
    %158 = vmatpush1.bf16.msra.mxu0 %v144
    %159 = vmatprep.subr.bf16.mxu0 0
    %160 = vmatpush1.bf16.msra.mxu0 %v145
    %161 = vmatprep.subr.bf16.mxu0 0
    %162 = vmatpush1.bf16.msra.mxu0 %v146
    %163 = vmatprep.subr.bf16.mxu0 0
    %164 = vmatpush1.bf16.msra.mxu0 0
    %165 = vmatprep.subr.bf16.mxu0 0
    %166 = vmatpush1.bf16.msra.mxu0 0
    %167 = vmatprep.subr.bf16.mxu0 0
    %168 = vmatpush1.bf16.msra.mxu0 0
    %169 = vmatprep.subr.bf16.mxu0 0
    %170 = vmatpush1.bf16.msra.mxu0 0
    %171 = vmatprep.subr.bf16.mxu0 0
    %172 = vmatpush1.bf16.msra.mxu0 0
    %173 = vmatprep.subr.bf16.mxu0 0
    %174 = vmatpush1.bf16.msra.mxu0 0
    %175 = vmatprep.subr.bf16.mxu0 0
    %176 = vmatpush1.bf16.msra.mxu0 0
    %177 = vmatprep.subr.bf16.mxu0 0
    %178 = vmatpush1.bf16.msra.mxu0 0
    %179 = vmatprep.subr.bf16.mxu0 0
    %180 = vmatpush1.bf16.msra.mxu0 0
    %181 = vmatprep.subr.bf16.mxu0 0
    %182 = vmatpush1.bf16.msra.mxu0 0
    %183 = vmatprep.subr.bf16.mxu0 0
    %184 = vmatpush1.bf16.msra.mxu0 0
    %185 = vmatprep.subr.bf16.mxu0 0
    %186 = vmatpush1.bf16.msra.mxu0 0
    %187 = vmatprep.mubr.bf16.mxu0 0
    %188 = vmatmul.mubr.bf16.gmra.mrb[0].mxu0 %v153
    %v189 = vpop.f32.mrb[0].mxu0
    %v190 = vadd.f32 %v125, %v189
    %v191 = vpop.f32.mrb[0].mxu0
    %v192 = vpop.f32.mrb[0].mxu0
    %v193 = vpop.f32.mrb[0].mxu0
    %194 = vdwg.mxu0
    %v195 = vxor.u32 %v190, 2147483648
    %v196 = vmul.f32 %v195, 1.442695
    %v197 = vpow.pop %v196
    %v198 = vadd.f32 %v197, 1.0
    %v199 = vrcp.pop %v198
    %v200 = vmul.f32 1.0, %v199
    %v201 = vtanh.pop %v190
    %v202 = vld [vmem:[#allocation12] sm:$0xff]
    %204 = vrot.lane.b32.xlu0 %v202, 32
    %v205 = vpop.permute.xlu0 %204
    %v207 = vmul.f32 %v200, %v205
    %209 = vrot.lane.b32.xlu0 %v201, 64
    %v210 = vpop.permute.xlu0 %209
    %v212 = vmul.f32 %v200, %v210
    %214 = vrot.lane.b32.xlu0 %v212, 32
    %v215 = vpop.permute.xlu0 %214
    %v217 = vadd.f32 %v207, %v215
    %v218 = vtanh.pop %v217
    %220 = vrot.lane.b32.xlu0 %v218, 64
    %v221 = vpop.permute.xlu0 %220
    %v223 = vmul.f32 %v200, %v221
    %225 = vrot.lane.b32.xlu0 %v223, 32
    %v226 = vpop.permute.xlu0 %225
    %228 = vst.msk [vmem:[#allocation11] sm:$0xff] %vm101, %v226
    %230 = vrot.lane.b32.xlu0 %v217, 96
    %v231 = vpop.permute.xlu0 %230
    %233 = vst.msk [vmem:[#allocation12] sm:$0xff] %vm101, %v231
    %234 = vst.msk [vmem:[#allocation2] sm:$0xff] %vm101, %v226
    %s235 = scalar_lea.vmem [#allocation11], 8
    %v236 = vld [vmem:[%s235] sm:$0xff]
    %238 = vrot.lane.b32.xlu0 %v236, 32
    %v239 = vpop.permute.xlu0 %238
    %241 = vst.msk [vmem:[#allocation2] sm:$0xff] %vm108, %v239
    %v242 = vld [vmem:[#allocation2] sm:$0xff]
    %v243 = vpack.c.bf16 %v242, %v242
    %s244 = scalar_lea.vmem [#allocation8], 32
    %v245 = vld [vmem:[%s244] sm:$0xf]
    %v246 = vld [vmem:[%s244 + $0x4] sm:$0xf]
    %v247 = vld [vmem:[%s244 + $0x8] sm:$0xf]
    %v248 = vld [vmem:[%s244 + $0xc] sm:$0xf]
    %v249 = vld [vmem:[%s244 + $0x10] sm:$0xf]
    %v250 = vld [vmem:[%s244 + $0x14] sm:$0xf]
    %v251 = vld [vmem:[%s244 + $0x18] sm:$0xf]
    %v252 = vld [vmem:[%s244 + $0x1c] sm:$0xf]
    %s253 = scalar_lea.vmem %s4, 1
    %v254 = vld [vmem:[%s253] sm:$0x1]
    %v256 = vlaneseq
    %v257 = vshrl.u32 %v256, 7
    %v258 = vsub.s32 0, %v257
    %v259 = vrot.slane %v254, %v258
    %v269 = vunpack.c.l.b16 %v245
    %v270 = vunpack.c.l.b16 %v246
    %v271 = vunpack.c.l.b16 %v247
    %v272 = vunpack.c.l.b16 %v248
    %v273 = vunpack.c.l.b16 %v249
    %v274 = vunpack.c.l.b16 %v250
    %v275 = vunpack.c.l.b16 %v251
    %v276 = vunpack.c.l.b16 %v252
    %v277 = vpack.c.b16 %v270, %v269
    %v278 = vpack.c.b16 %v272, %v271
    %v279 = vpack.c.b16 %v274, %v273
    %v280 = vpack.c.b16 %v276, %v275
    %v286 = vsel %vm151, %v243, 0
    %288 = vmatprep.subr.bf16.mxu0 0
    %289 = vmatpush1.bf16.msra.mxu0 %v277
    %290 = vmatprep.subr.bf16.mxu0 0
    %291 = vmatpush1.bf16.msra.mxu0 %v278
    %292 = vmatprep.subr.bf16.mxu0 0
    %293 = vmatpush1.bf16.msra.mxu0 %v279
    %294 = vmatprep.subr.bf16.mxu0 0
    %295 = vmatpush1.bf16.msra.mxu0 %v280
    %296 = vmatprep.subr.bf16.mxu0 0
    %297 = vmatpush1.bf16.msra.mxu0 0
    %298 = vmatprep.subr.bf16.mxu0 0
    %299 = vmatpush1.bf16.msra.mxu0 0
    %300 = vmatprep.subr.bf16.mxu0 0
    %301 = vmatpush1.bf16.msra.mxu0 0
    %302 = vmatprep.subr.bf16.mxu0 0
    %303 = vmatpush1.bf16.msra.mxu0 0
    %304 = vmatprep.subr.bf16.mxu0 0
    %305 = vmatpush1.bf16.msra.mxu0 0
    %306 = vmatprep.subr.bf16.mxu0 0
    %307 = vmatpush1.bf16.msra.mxu0 0
    %308 = vmatprep.subr.bf16.mxu0 0
    %309 = vmatpush1.bf16.msra.mxu0 0
    %310 = vmatprep.subr.bf16.mxu0 0
    %311 = vmatpush1.bf16.msra.mxu0 0
    %312 = vmatprep.subr.bf16.mxu0 0
    %313 = vmatpush1.bf16.msra.mxu0 0
    %314 = vmatprep.subr.bf16.mxu0 0
    %315 = vmatpush1.bf16.msra.mxu0 0
    %316 = vmatprep.subr.bf16.mxu0 0
    %317 = vmatpush1.bf16.msra.mxu0 0
    %318 = vmatprep.subr.bf16.mxu0 0
    %319 = vmatpush1.bf16.msra.mxu0 0
    %320 = vmatprep.mubr.bf16.mxu0 0
    %321 = vmatmul.mubr.bf16.gmra.mrb[0].mxu0 %v286
    %v322 = vpop.f32.mrb[0].mxu0
    %v323 = vadd.f32 %v259, %v322
    %v324 = vpop.f32.mrb[0].mxu0
    %v325 = vpop.f32.mrb[0].mxu0
    %v326 = vpop.f32.mrb[0].mxu0
    %327 = vdwg.mxu0
    %v328 = vxor.u32 %v323, 2147483648
    %v329 = vmul.f32 %v328, 1.442695
    %v330 = vpow.pop %v329
    %v331 = vadd.f32 %v330, 1.0
    %v332 = vrcp.pop %v331
    %v333 = vmul.f32 1.0, %v332
    %v334 = vtanh.pop %v323
    %s335 = scalar_lea.vmem [#allocation12], 8
    %v336 = vld [vmem:[%s335] sm:$0xff]
    %338 = vrot.lane.b32.xlu0 %v336, 32
    %v339 = vpop.permute.xlu0 %338
    %v341 = vmul.f32 %v333, %v339
    %343 = vrot.lane.b32.xlu0 %v334, 64
    %v344 = vpop.permute.xlu0 %343
    %v346 = vmul.f32 %v333, %v344
    %348 = vrot.lane.b32.xlu0 %v346, 32
    %v349 = vpop.permute.xlu0 %348
    %v351 = vadd.f32 %v341, %v349
    %v352 = vtanh.pop %v351
    %354 = vrot.lane.b32.xlu0 %v352, 64
    %v355 = vpop.permute.xlu0 %354
    %v357 = vmul.f32 %v333, %v355
    %359 = vrot.lane.b32.xlu0 %v357, 32
    %v360 = vpop.permute.xlu0 %359
    %362 = vst.msk [vmem:[%s235] sm:$0xff] %vm101, %v360
    %364 = vrot.lane.b32.xlu0 %v351, 96
    %v365 = vpop.permute.xlu0 %364
    %367 = vst.msk [vmem:[%s335] sm:$0xff] %vm101, %v365
    %v368 = vpack.c.bf16 %v357, %v357
    %v369 = vld [vmem:[#allocation9] sm:$0xf]
    %v370 = vld [vmem:[#allocation9 + $0x4] sm:$0xf]
    %v371 = vld [vmem:[#allocation9 + $0x8] sm:$0xf]
    %v372 = vld [vmem:[#allocation9 + $0xc] sm:$0xf]
    %v373 = vld [vmem:[%s6] sm:$0x1]
    %v375 = vlaneseq
    %v376 = vshrl.u32 %v375, 7
    %v377 = vsub.s32 0, %v376
    %v378 = vrot.slane %v373, %v377
    %381 = vrot.lane.b32.xlu0 %v368, 32
    %v382 = vpop.permute.xlu0 %381
    %v387 = vunpack.c.l.b16 %v369
    %v388 = vunpack.c.l.b16 %v370
    %v389 = vunpack.c.l.b16 %v371
    %v390 = vunpack.c.l.b16 %v372
    %v391 = vpack.c.b16 %v388, %v387
    %v392 = vpack.c.b16 %v390, %v389
    %v396 = vsel %vm101, %v382, 0
    %398 = vmatprep.subr.bf16.mxu0 0
    %399 = vmatpush1.bf16.msra.mxu0 %v391
    %400 = vmatprep.subr.bf16.mxu0 0
    %401 = vmatpush1.bf16.msra.mxu0 %v392
    %402 = vmatprep.subr.bf16.mxu0 0
    %403 = vmatpush1.bf16.msra.mxu0 0
    %404 = vmatprep.subr.bf16.mxu0 0
    %405 = vmatpush1.bf16.msra.mxu0 0
    %406 = vmatprep.subr.bf16.mxu0 0
    %407 = vmatpush1.bf16.msra.mxu0 0
    %408 = vmatprep.subr.bf16.mxu0 0
    %409 = vmatpush1.bf16.msra.mxu0 0
    %410 = vmatprep.subr.bf16.mxu0 0
    %411 = vmatpush1.bf16.msra.mxu0 0
    %412 = vmatprep.subr.bf16.mxu0 0
    %413 = vmatpush1.bf16.msra.mxu0 0
    %414 = vmatprep.subr.bf16.mxu0 0
    %415 = vmatpush1.bf16.msra.mxu0 0
    %416 = vmatprep.subr.bf16.mxu0 0
    %417 = vmatpush1.bf16.msra.mxu0 0
    %418 = vmatprep.subr.bf16.mxu0 0
    %419 = vmatpush1.bf16.msra.mxu0 0
    %420 = vmatprep.subr.bf16.mxu0 0
    %421 = vmatpush1.bf16.msra.mxu0 0
    %422 = vmatprep.subr.bf16.mxu0 0
    %423 = vmatpush1.bf16.msra.mxu0 0
    %424 = vmatprep.subr.bf16.mxu0 0
    %425 = vmatpush1.bf16.msra.mxu0 0
    %426 = vmatprep.subr.bf16.mxu0 0
    %427 = vmatpush1.bf16.msra.mxu0 0
    %428 = vmatprep.subr.bf16.mxu0 0
    %429 = vmatpush1.bf16.msra.mxu0 0
    %430 = vmatprep.mubr.bf16.mxu0 0
    %431 = vmatmul.mubr.bf16.gmra.mrb[0].mxu0 %v396
    %v432 = vpop.f32.mrb[0].mxu0
    %v433 = vadd.f32 %v378, %v432
    %v434 = vpop.f32.mrb[0].mxu0
    %v435 = vpop.f32.mrb[0].mxu0
    %v436 = vpop.f32.mrb[0].mxu0
    %437 = vdwg.mxu0
    %438 = vst [vmem:[%s7] sm:$0xff] %v433
    // Predicated region
    $region50: #{decoder_forward.1} parent=1 // pred_check
      _
    $region51: #{decoder_forward.1} parent=1 // pred_check_branch
      %440 = sbr.rel (0) target = $region53
    $region52: #{decoder_forward.1} parent=1 // pred_region
      _
    $region53: #{decoder_forward.1} parent=1 // pred_fallthru
      _
    // Predicated region
    $region54: #{decoder_forward.1} parent=1 // pred_check
      _
    $region55: #{decoder_forward.1} parent=1 // pred_check_branch
      %442 = sbr.rel (0) target = $region57
    $region56: #{decoder_forward.1} parent=1 // pred_region
      %s444 = ssub.s32 256, 256
      %445 = vsyncadd [#allocation5], %s444
      %s446 = sshll.u32 [#allocation11], 4
      %s447 = int_to_ptr.vmem [resolvable:$true] %s446
      %452 = dma.vmem_to_hbm [thread:$0]  %s447, 256, %s8, [#allocation5], 128, 128, 8
    $region57: #{decoder_forward.1} parent=1 // pred_fallthru
      _
    // Predicated region
    $region58: #{decoder_forward.1} parent=1 // pred_check
      _
    $region59: #{decoder_forward.1} parent=1 // pred_check_branch
      %454 = sbr.rel (0) target = $region61
    $region60: #{decoder_forward.1} parent=1 // pred_region
      %s456 = ssub.s32 256, 256
      %457 = vsyncadd [#allocation13], %s456
      %s458 = sshll.u32 [#allocation12], 4
      %s459 = int_to_ptr.vmem [resolvable:$true] %s458
      %464 = dma.vmem_to_hbm [thread:$0]  %s459, 256, %s9, [#allocation13], 128, 128, 8
    $region61: #{decoder_forward.1} parent=1 // pred_fallthru
      _
    // Predicated region
    $region62: #{decoder_forward.1} parent=1 // pred_check
      _
    $region63: #{decoder_forward.1} parent=1 // pred_check_branch
      %466 = sbr.rel (0) target = $region65
    $region64: #{decoder_forward.1} parent=1 // pred_region
      _
    $region65: #{decoder_forward.1} parent=1 // pred_fallthru
      _
    // Predicated region
    $region66: #{decoder_forward.1} parent=1 // pred_check
      _
    $region67: #{decoder_forward.1} parent=1 // pred_check_branch
      %468 = sbr.rel (0) target = $region69
    $region68: #{decoder_forward.1} parent=1 // pred_region
      %469 = dma.done [#allocation5], 256
    $region69: #{decoder_forward.1} parent=1 // pred_fallthru
      _
    // Predicated region
    $region70: #{decoder_forward.1} parent=1 // pred_check
      _
    $region71: #{decoder_forward.1} parent=1 // pred_check_branch
      %471 = sbr.rel (0) target = $region73
    $region72: #{decoder_forward.1} parent=1 // pred_region
      %472 = dma.done [#allocation13], 256
    $region73: #{decoder_forward.1} parent=1 // pred_fallthru
      _
    %473 = vsyncpa [#allocation4], 1
    %474 = vsyncpa [#allocation7], 1
    %475 = vsyncpa [#allocation10], 1
    %476 = vsyncpa [#allocation5], 1
    %477 = vsyncpa [#allocation13], 1

</llo_original>
